<compile_context>
chip_gen: v7x
topology: tpu7x:2x2x1
jax: 0.10.0
libtpu: 0.0.40
codegen_flags: <defaults>
</compile_context>

<pallas_src>
import functools

import jax
import jax.numpy as jnp
from jax import lax
from jax.experimental import pallas as pl
from jax.experimental.pallas import tpu as pltpu

_LANES = 128
_CHUNK_ROWS = 32                        # 32 sublane rows: int8-tile aligned
_TILE_UNIT = _LANES * _CHUNK_ROWS       # 4096 points = minimal tile
_DEFAULT_MAX_TILE_M = 256 * 1024        # ~12.5 MB double-buffered VMEM at f32


def _pick_tile_m(n_points, max_tile_m):
    """Largest 4096-aligned tile <= max_tile_m, targeting a grid of >= 4 steps
    (>= 2 per v7x TensorCore) so DMA of step i+1 overlaps compute of step i on
    both cores; on v5e/v6e the same choice simply amortizes per-step overhead."""
    max_units = max(1, max_tile_m // _TILE_UNIT)
    total_units = -(-n_points // _TILE_UNIT)            # ceil
    if total_units <= 1:
        units = 1
    elif total_units < 4:
        units = -(-total_units // 2)                    # grid == 2
    else:
        units = max(1, total_units // 4)                # grid >= 4
    return min(units, max_units) * _TILE_UNIT


# ----------------------------------------------------------------------------
# Pallas kernel: per-point 4x4 projective transform + perspective divide.
# ----------------------------------------------------------------------------
def warp_proj_kernel(trans_ref, t_ref, pts_ref, out_ref):
    # trans_ref: SMEM (T, 16) f32, trans_ref[t, 4*j + k] = transform[t, j, k]
    # t_ref:     VMEM (tile_r, 128) i8/i32  time index per point
    # pts_ref:   VMEM (3, tile_r, 128) f32  x/y/z planes
    # out_ref:   VMEM (3, tile_r, 128) f32
    T = trans_ref.shape[0]
    tile_r = out_ref.shape[1]
    n_chunks = tile_r // _CHUNK_ROWS        # tile_r is always a multiple of 32

    def chunk(c, carry):
        r0 = pl.multiple_of(c * _CHUNK_ROWS, _CHUNK_ROWS)
        rows = pl.ds(r0, _CHUNK_ROWS)

        t = t_ref[rows, :].astype(jnp.int32)     # widen i8 -> i32 once
        x = pts_ref[0, rows, :]
        y = pts_ref[1, rows, :]
        z = pts_ref[2, rows, :]

        # Staircase masks (t >= k): the select chain below resolves to
        # transform[clamp(t, 0, T-1)], matching the reference's gather-clamp
        # semantics for any out-of-range t.  Computed once, reused by all 16
        # coefficient gathers.
        masks = [t >= tt for tt in range(1, T)]

        def coeff(idx):
            # coeff[m] = transform[t[m]].flatten()[idx], as a (T-1)-deep select
            # chain over SMEM scalars (T is tiny, unrolls to a few VPU selects).
            # TODO(synk): for large T replace with an idle-MXU one-hot gather.
            val = trans_ref[0, idx]
            for tt in range(1, T):
                val = jnp.where(masks[tt - 1], trans_ref[tt, idx], val)
            return val

        def proj_row(j):
            # Homogeneous w=1 input channel is implicit: the translation column
            # is simply added (no 4th channel streamed from HBM).
            return (coeff(4 * j + 0) * x + coeff(4 * j + 1) * y
                    + coeff(4 * j + 2) * z + coeff(4 * j + 3))

        # w-row first, rows 0..2 scaled & stored immediately afterwards: the
        # chunk's live set stays ~45 vregs (fits the 64-vreg file, no VMEM
        # round-trips of intermediates even at the largest grid blocks).
        w = proj_row(3)
        # Guard only exact zeros (reachable on padded lanes if transform[0] is
        # singular; the reference would give inf/NaN for such points anyway).
        w = jnp.where(w == 0.0, jnp.float32(1.0), w)
        # EUP approximate reciprocal + one Newton-Raphson step (rel. err ~1e-6,
        # required to stay inside the 1e-4 tolerance) instead of f32 divides.
        inv_w = pl.reciprocal(w, approx=True)
        inv_w = inv_w * (2.0 - w * inv_w)

        for j in range(3):
            out_ref[j, rows, :] = proj_row(j) * inv_w
        return carry

    lax.fori_loop(0, n_chunks, chunk, 0)


# ----------------------------------------------------------------------------
# Channels-first core (preferred integration path: no transpose glue).
# ----------------------------------------------------------------------------
def _warp_proj_cf(transform_all, pts_cf, t_flat, max_tile_m):
    """pts_cf: (3, M) f32, t_flat: (M,) int -> (3, M) f32."""
    T = transform_all.shape[0]
    M = pts_cf.shape[1]
    t_dtype = jnp.int8 if T <= 127 else jnp.int32     # 1 B/pt of t traffic

    tile_m = _pick_tile_m(M, max_tile_m)
    tile_r = tile_m // _LANES
    grid_n = -(-M // tile_m)
    M_pad = grid_n * tile_m
    pad = M_pad - M

    pts_p = jnp.pad(pts_cf.astype(jnp.float32), ((0, 0), (0, pad)))
    pts_p = pts_p.reshape(3, M_pad // _LANES, _LANES)
    t_p = jnp.pad(t_flat.astype(t_dtype), (0, pad)).reshape(M_pad // _LANES, _LANES)
    trans_flat = transform_all.reshape(T, 16).astype(jnp.float32)   # SMEM table

    out = pl.pallas_call(
        warp_proj_kernel,
        out_shape=jax.ShapeDtypeStruct((3, M_pad // _LANES, _LANES), jnp.float32),
        grid_spec=pltpu.PrefetchScalarGridSpec(
            num_scalar_prefetch=0,
            grid=(grid_n,),
            in_specs=[
                pl.BlockSpec(memory_space=pltpu.MemorySpace.SMEM),       # transforms
                pl.BlockSpec((tile_r, _LANES), lambda i: (i, 0)),        # t
                pl.BlockSpec((3, tile_r, _LANES), lambda i: (0, i, 0)),  # pts
            ],
            out_specs=pl.BlockSpec((3, tile_r, _LANES), lambda i: (0, i, 0)),
        ),
        compiler_params=pltpu.CompilerParams(
            dimension_semantics=("parallel",),
            # Largest tile (256K pts) needs ~12.5 MB double-buffered; 48 MiB
            # leaves headroom on v5e/v6e (128 MiB physical) and stays under
            # v7x's 64 MiB physical VMEM per TensorCore.
            vmem_limit_bytes=48 * 1024 * 1024,
        ),
    )(trans_flat, t_p, pts_p)

    # Padded lanes (t=0, pts=0) are sliced off here.
    return out.reshape(3, M_pad)[:, :M]


@functools.partial(jax.jit, static_argnames=("max_tile_m",))
def warp_proj_forward_cf(transform_all, pts_cf, t, max_tile_m=_DEFAULT_MAX_TILE_M):
    """Channels-first entry point: pts_cf (3, M), t (M,) -> (3, M).
    Preferred when the surrounding model keeps the point cloud channels-first;
    avoids both layout copies of the (..., 3) wrapper."""
    return _warp_proj_cf(transform_all, pts_cf, t.reshape(-1), max_tile_m)


# ----------------------------------------------------------------------------
# Module-faithful wrapper: pts (..., 3), t (...,) -> (..., 3).
# ----------------------------------------------------------------------------
@functools.partial(jax.jit, static_argnames=("max_tile_m",))
def warp_proj_forward(transform_all, pts, t, max_tile_m=_DEFAULT_MAX_TILE_M):
    """transform_all: (T, 4, 4); pts: (..., 3); t: (...,) int.
    NOTE: this interface pays one transpose copy in and one out (layout glue
    ~2x the kernel's own HBM traffic); keep points channels-first in the
    surrounding model and call warp_proj_forward_cf to skip it."""
    ori_shape = pts.shape
    pts_cf = pts.reshape(-1, 3).astype(jnp.float32).T     # (3, M): single copy
    out_cf = _warp_proj_cf(transform_all, pts_cf, t.reshape(-1), max_tile_m)
    return out_cf.T.reshape(ori_shape)                     # single copy back


# ----------------------------------------------------------------------------
# Deterministic "module init": reproduces WarpProj.__init__ math in plain JAX.
# ----------------------------------------------------------------------------
def build_transforms(key, time_len, n_pts, num_frames):
    k1, k2, k3 = jax.random.split(key, 3)
    uv_gt_init = jax.random.normal(k1, (num_frames, n_pts, 4), jnp.float32)
    # synthetic canonical point set (stand-in for np.load(canonicaldir)):
    canonical_xyz = jax.random.normal(k2, (n_pts, 3), jnp.float32)
    canonical_w = 3.0 + 0.3 * jax.random.normal(k3, (n_pts, 1), jnp.float32)
    canonical = jnp.concatenate([canonical_xyz, canonical_w], axis=-1)
    uv_gt_id2t = jnp.arange(time_len, dtype=jnp.int32) % num_frames

    pt3d = jnp.concatenate(
        [uv_gt_init[:, :, :3], jnp.ones_like(uv_gt_init[:, :, 3:4])], axis=-1)
    pt_src = pt3d                                   # (F, N, 4)
    pt_tar = canonical[None, ...]                   # (1, N, 4)
    pt_tar_T = jnp.swapaxes(pt_tar, 1, 2)           # (1, 4, N)
    pt_src_T = jnp.swapaxes(pt_src, 1, 2)           # (F, 4, N)
    gram = pt_src_T @ pt_src                        # (F, 4, 4)
    transform = pt_tar_T @ pt_src @ jnp.linalg.inv(gram)   # (F, 4, 4)
    transform = transform[uv_gt_id2t]               # (time_len, 4, 4)
    dummy_trans = transform[0:1]                    # buffer
    param = transform[1:]                           # parameter
    return jnp.concatenate([dummy_trans, param], axis=0)   # get_transform()


def reference_forward(transform_all, pts, t):
    ori_shape = pts.shape
    pts2 = pts.reshape(-1, 3)
    t2 = t.reshape(-1).astype(jnp.int32)
    trans = transform_all[t2]                                       # (M, 4, 4)
    ph = jnp.concatenate([pts2, jnp.ones_like(pts2[:, :1])], axis=-1)
    proj = jnp.einsum("mij,mj->mi", trans, ph)                      # (M, 4)
    out = proj[:, :3] / proj[:, 3:4]
    return out.reshape(ori_shape)


if __name__ == "__main__":
    key = jax.random.PRNGKey(0)
    k_t, k_p1, k_m1, k_p2, k_m2, k_p3, k_m3 = jax.random.split(key, 7)

    time_len = 6
    transform_all = build_transforms(k_t, time_len=time_len, n_pts=64, num_frames=4)

    # Case A: pts (2, 8, 10, 3), t (2, 8, 10) -> M = 160 (heavy padding).
    pts_a = jax.random.normal(k_p1, (2, 8, 10, 3), jnp.float32)
    t_a = jax.random.randint(k_m1, (2, 8, 10), 0, time_len, jnp.int32)
    out_a = jax.block_until_ready(warp_proj_forward(transform_all, pts_a, t_a))
    ref_a = reference_forward(transform_all, pts_a, t_a)
    if not jnp.allclose(out_a, ref_a, rtol=1e-4, atol=1e-4):
        raise AssertionError("Pallas kernel output does not match reference (case A)")

    # Case B: pts (3, 700, 3) -> M = 2100 (single 4096-pt block, padding).
    pts_b = jax.random.normal(k_p2, (3, 700, 3), jnp.float32)
    t_b = jax.random.randint(k_m2, (3, 700), 0, time_len, jnp.int32)
    out_b = jax.block_until_ready(warp_proj_forward(transform_all, pts_b, t_b))
    ref_b = reference_forward(transform_all, pts_b, t_b)
    if not jnp.allclose(out_b, ref_b, rtol=1e-4, atol=1e-4):
        raise AssertionError("Pallas kernel output does not match reference (case B)")

    # Case C: pts (20000, 3) -> M = 20000 (multi-step grid: 5 blocks of 4096).
    pts_c = jax.random.normal(k_p3, (20000, 3), jnp.float32)
    t_c = jax.random.randint(k_m3, (20000,), 0, time_len, jnp.int32)
    out_c = jax.block_until_ready(warp_proj_forward(transform_all, pts_c, t_c))
    ref_c = reference_forward(transform_all, pts_c, t_c)
    if not jnp.allclose(out_c, ref_c, rtol=1e-4, atol=1e-4):
        raise AssertionError("Pallas kernel output does not match reference (case C)")

    # Channels-first path (no transpose glue) on case C data.
    out_cf = jax.block_until_ready(
        warp_proj_forward_cf(transform_all, pts_c.T, t_c))
    if not jnp.allclose(out_cf.T, ref_c, rtol=1e-4, atol=1e-4):
        raise AssertionError("Pallas kernel output does not match reference (cf path)")

    print("KERNEL_OK")
</pallas_src>

<mosaic_0001>
module attributes {stable_mosaic.version = 11 : i64} {
  func.func @warp_proj_kernel(%arg0: i32, %arg1: memref<6x16xf32, #tpu.memory_space<smem>>, %arg2: memref<32x128xi8, #tpu.memory_space<vmem>>, %arg3: memref<3x32x128xf32, #tpu.memory_space<vmem>>, %arg4: memref<3x32x128xf32, #tpu.memory_space<vmem>>) attributes {dimension_semantics = [#tpu.dimension_semantics<parallel>], iteration_bounds = array<i64: 1>, scalar_prefetch = 0 : i64, scratch_operands = 0 : i64, tpu.core_type = #tpu.core_type<tc>, window_params = [{transform_indices = @transform_0, window_bounds = array<i64: 6, 16>}, {transform_indices = @transform_1, window_bounds = array<i64: 32, 128>}, {transform_indices = @transform_2, window_bounds = array<i64: 3, 32, 128>}, {transform_indices = @transform_3, window_bounds = array<i64: 3, 32, 128>}]} {
    %c0_i32 = arith.constant 0 : i32
    %c32_i32 = arith.constant 32 : i32
    %0 = arith.muli %c0_i32, %c32_i32 : i32
    %1 = tpu.assume_multiple %0, 32 : i32
    %2 = arith.index_cast %1 : i32 to index
    %c0 = arith.constant 0 : index
    %3 = vector.load %arg2[%2, %c0] : memref<32x128xi8, #tpu.memory_space<vmem>>, vector<32x128xi8>
    %4 = arith.extsi %3 : vector<32x128xi8> to vector<32x128xi32>
    %c0_0 = arith.constant 0 : index
    %5 = arith.index_cast %1 : i32 to index
    %c0_1 = arith.constant 0 : index
    %6 = vector.load %arg3[%c0_0, %5, %c0_1] : memref<3x32x128xf32, #tpu.memory_space<vmem>>, vector<1x32x128xf32>
    %7 = vector.shape_cast %6 : vector<1x32x128xf32> to vector<32x128xf32>
    %c1 = arith.constant 1 : index
    %8 = arith.index_cast %1 : i32 to index
    %c0_2 = arith.constant 0 : index
    %9 = vector.load %arg3[%c1, %8, %c0_2] : memref<3x32x128xf32, #tpu.memory_space<vmem>>, vector<1x32x128xf32>
    %10 = vector.shape_cast %9 : vector<1x32x128xf32> to vector<32x128xf32>
    %c2 = arith.constant 2 : index
    %11 = arith.index_cast %1 : i32 to index
    %c0_3 = arith.constant 0 : index
    %12 = vector.load %arg3[%c2, %11, %c0_3] : memref<3x32x128xf32, #tpu.memory_space<vmem>>, vector<1x32x128xf32>
    %13 = vector.shape_cast %12 : vector<1x32x128xf32> to vector<32x128xf32>
    %c1_i32 = arith.constant 1 : i32
    %14 = vector.broadcast %c1_i32 : i32 to vector<32x128xi32>
    %15 = arith.cmpi sge, %4, %14 : vector<32x128xi32>
    %c2_i32 = arith.constant 2 : i32
    %16 = vector.broadcast %c2_i32 : i32 to vector<32x128xi32>
    %17 = arith.cmpi sge, %4, %16 : vector<32x128xi32>
    %c3_i32 = arith.constant 3 : i32
    %18 = vector.broadcast %c3_i32 : i32 to vector<32x128xi32>
    %19 = arith.cmpi sge, %4, %18 : vector<32x128xi32>
    %c4_i32 = arith.constant 4 : i32
    %20 = vector.broadcast %c4_i32 : i32 to vector<32x128xi32>
    %21 = arith.cmpi sge, %4, %20 : vector<32x128xi32>
    %c5_i32 = arith.constant 5 : i32
    %22 = vector.broadcast %c5_i32 : i32 to vector<32x128xi32>
    %23 = arith.cmpi sge, %4, %22 : vector<32x128xi32>
    %c0_4 = arith.constant 0 : index
    %c12 = arith.constant 12 : index
    %24 = memref.load %arg1[%c0_4, %c12] : memref<6x16xf32, #tpu.memory_space<smem>>
    %c1_5 = arith.constant 1 : index
    %c12_6 = arith.constant 12 : index
    %25 = memref.load %arg1[%c1_5, %c12_6] : memref<6x16xf32, #tpu.memory_space<smem>>
    %26 = vector.broadcast %25 : f32 to vector<32x128xf32>
    %27 = vector.broadcast %24 : f32 to vector<32x128xf32>
    %28 = arith.select %15, %26, %27 : vector<32x128xi1>, vector<32x128xf32>
    %c2_7 = arith.constant 2 : index
    %c12_8 = arith.constant 12 : index
    %29 = memref.load %arg1[%c2_7, %c12_8] : memref<6x16xf32, #tpu.memory_space<smem>>
    %30 = vector.broadcast %29 : f32 to vector<32x128xf32>
    %31 = arith.select %17, %30, %28 : vector<32x128xi1>, vector<32x128xf32>
    %c3 = arith.constant 3 : index
    %c12_9 = arith.constant 12 : index
    %32 = memref.load %arg1[%c3, %c12_9] : memref<6x16xf32, #tpu.memory_space<smem>>
    %33 = vector.broadcast %32 : f32 to vector<32x128xf32>
    %34 = arith.select %19, %33, %31 : vector<32x128xi1>, vector<32x128xf32>
    %c4 = arith.constant 4 : index
    %c12_10 = arith.constant 12 : index
    %35 = memref.load %arg1[%c4, %c12_10] : memref<6x16xf32, #tpu.memory_space<smem>>
    %36 = vector.broadcast %35 : f32 to vector<32x128xf32>
    %37 = arith.select %21, %36, %34 : vector<32x128xi1>, vector<32x128xf32>
    %c5 = arith.constant 5 : index
    %c12_11 = arith.constant 12 : index
    %38 = memref.load %arg1[%c5, %c12_11] : memref<6x16xf32, #tpu.memory_space<smem>>
    %39 = vector.broadcast %38 : f32 to vector<32x128xf32>
    %40 = arith.select %23, %39, %37 : vector<32x128xi1>, vector<32x128xf32>
    %41 = arith.mulf %40, %7 : vector<32x128xf32>
    %c0_12 = arith.constant 0 : index
    %c13 = arith.constant 13 : index
    %42 = memref.load %arg1[%c0_12, %c13] : memref<6x16xf32, #tpu.memory_space<smem>>
    %c1_13 = arith.constant 1 : index
    %c13_14 = arith.constant 13 : index
    %43 = memref.load %arg1[%c1_13, %c13_14] : memref<6x16xf32, #tpu.memory_space<smem>>
    %44 = vector.broadcast %43 : f32 to vector<32x128xf32>
    %45 = vector.broadcast %42 : f32 to vector<32x128xf32>
    %46 = arith.select %15, %44, %45 : vector<32x128xi1>, vector<32x128xf32>
    %c2_15 = arith.constant 2 : index
    %c13_16 = arith.constant 13 : index
    %47 = memref.load %arg1[%c2_15, %c13_16] : memref<6x16xf32, #tpu.memory_space<smem>>
    %48 = vector.broadcast %47 : f32 to vector<32x128xf32>
    %49 = arith.select %17, %48, %46 : vector<32x128xi1>, vector<32x128xf32>
    %c3_17 = arith.constant 3 : index
    %c13_18 = arith.constant 13 : index
    %50 = memref.load %arg1[%c3_17, %c13_18] : memref<6x16xf32, #tpu.memory_space<smem>>
    %51 = vector.broadcast %50 : f32 to vector<32x128xf32>
    %52 = arith.select %19, %51, %49 : vector<32x128xi1>, vector<32x128xf32>
    %c4_19 = arith.constant 4 : index
    %c13_20 = arith.constant 13 : index
    %53 = memref.load %arg1[%c4_19, %c13_20] : memref<6x16xf32, #tpu.memory_space<smem>>
    %54 = vector.broadcast %53 : f32 to vector<32x128xf32>
    %55 = arith.select %21, %54, %52 : vector<32x128xi1>, vector<32x128xf32>
    %c5_21 = arith.constant 5 : index
    %c13_22 = arith.constant 13 : index
    %56 = memref.load %arg1[%c5_21, %c13_22] : memref<6x16xf32, #tpu.memory_space<smem>>
    %57 = vector.broadcast %56 : f32 to vector<32x128xf32>
    %58 = arith.select %23, %57, %55 : vector<32x128xi1>, vector<32x128xf32>
    %59 = arith.mulf %58, %10 : vector<32x128xf32>
    %60 = arith.addf %41, %59 : vector<32x128xf32>
    %c0_23 = arith.constant 0 : index
    %c14 = arith.constant 14 : index
    %61 = memref.load %arg1[%c0_23, %c14] : memref<6x16xf32, #tpu.memory_space<smem>>
    %c1_24 = arith.constant 1 : index
    %c14_25 = arith.constant 14 : index
    %62 = memref.load %arg1[%c1_24, %c14_25] : memref<6x16xf32, #tpu.memory_space<smem>>
    %63 = vector.broadcast %62 : f32 to vector<32x128xf32>
    %64 = vector.broadcast %61 : f32 to vector<32x128xf32>
    %65 = arith.select %15, %63, %64 : vector<32x128xi1>, vector<32x128xf32>
    %c2_26 = arith.constant 2 : index
    %c14_27 = arith.constant 14 : index
    %66 = memref.load %arg1[%c2_26, %c14_27] : memref<6x16xf32, #tpu.memory_space<smem>>
    %67 = vector.broadcast %66 : f32 to vector<32x128xf32>
    %68 = arith.select %17, %67, %65 : vector<32x128xi1>, vector<32x128xf32>
    %c3_28 = arith.constant 3 : index
    %c14_29 = arith.constant 14 : index
    %69 = memref.load %arg1[%c3_28, %c14_29] : memref<6x16xf32, #tpu.memory_space<smem>>
    %70 = vector.broadcast %69 : f32 to vector<32x128xf32>
    %71 = arith.select %19, %70, %68 : vector<32x128xi1>, vector<32x128xf32>
    %c4_30 = arith.constant 4 : index
    %c14_31 = arith.constant 14 : index
    %72 = memref.load %arg1[%c4_30, %c14_31] : memref<6x16xf32, #tpu.memory_space<smem>>
    %73 = vector.broadcast %72 : f32 to vector<32x128xf32>
    %74 = arith.select %21, %73, %71 : vector<32x128xi1>, vector<32x128xf32>
    %c5_32 = arith.constant 5 : index
    %c14_33 = arith.constant 14 : index
    %75 = memref.load %arg1[%c5_32, %c14_33] : memref<6x16xf32, #tpu.memory_space<smem>>
    %76 = vector.broadcast %75 : f32 to vector<32x128xf32>
    %77 = arith.select %23, %76, %74 : vector<32x128xi1>, vector<32x128xf32>
    %78 = arith.mulf %77, %13 : vector<32x128xf32>
    %79 = arith.addf %60, %78 : vector<32x128xf32>
    %c0_34 = arith.constant 0 : index
    %c15 = arith.constant 15 : index
    %80 = memref.load %arg1[%c0_34, %c15] : memref<6x16xf32, #tpu.memory_space<smem>>
    %c1_35 = arith.constant 1 : index
    %c15_36 = arith.constant 15 : index
    %81 = memref.load %arg1[%c1_35, %c15_36] : memref<6x16xf32, #tpu.memory_space<smem>>
    %82 = vector.broadcast %81 : f32 to vector<32x128xf32>
    %83 = vector.broadcast %80 : f32 to vector<32x128xf32>
    %84 = arith.select %15, %82, %83 : vector<32x128xi1>, vector<32x128xf32>
    %c2_37 = arith.constant 2 : index
    %c15_38 = arith.constant 15 : index
    %85 = memref.load %arg1[%c2_37, %c15_38] : memref<6x16xf32, #tpu.memory_space<smem>>
    %86 = vector.broadcast %85 : f32 to vector<32x128xf32>
    %87 = arith.select %17, %86, %84 : vector<32x128xi1>, vector<32x128xf32>
    %c3_39 = arith.constant 3 : index
    %c15_40 = arith.constant 15 : index
    %88 = memref.load %arg1[%c3_39, %c15_40] : memref<6x16xf32, #tpu.memory_space<smem>>
    %89 = vector.broadcast %88 : f32 to vector<32x128xf32>
    %90 = arith.select %19, %89, %87 : vector<32x128xi1>, vector<32x128xf32>
    %c4_41 = arith.constant 4 : index
    %c15_42 = arith.constant 15 : index
    %91 = memref.load %arg1[%c4_41, %c15_42] : memref<6x16xf32, #tpu.memory_space<smem>>
    %92 = vector.broadcast %91 : f32 to vector<32x128xf32>
    %93 = arith.select %21, %92, %90 : vector<32x128xi1>, vector<32x128xf32>
    %c5_43 = arith.constant 5 : index
    %c15_44 = arith.constant 15 : index
    %94 = memref.load %arg1[%c5_43, %c15_44] : memref<6x16xf32, #tpu.memory_space<smem>>
    %95 = vector.broadcast %94 : f32 to vector<32x128xf32>
    %96 = arith.select %23, %95, %93 : vector<32x128xi1>, vector<32x128xf32>
    %97 = arith.addf %79, %96 : vector<32x128xf32>
    %cst = arith.constant 0.000000e+00 : f32
    %98 = vector.broadcast %cst : f32 to vector<32x128xf32>
    %99 = arith.cmpf oeq, %97, %98 : vector<32x128xf32>
    %cst_45 = arith.constant 1.000000e+00 : f32
    %100 = vector.broadcast %cst_45 : f32 to vector<32x128xf32>
    %101 = arith.select %99, %100, %97 : vector<32x128xi1>, vector<32x128xf32>
    %102 = tpu.reciprocal %101 {approx = true} : vector<32x128xf32> -> vector<32x128xf32>
    %103 = arith.mulf %101, %102 : vector<32x128xf32>
    %cst_46 = arith.constant 2.000000e+00 : f32
    %104 = vector.broadcast %cst_46 : f32 to vector<32x128xf32>
    %105 = arith.subf %104, %103 : vector<32x128xf32>
    %106 = arith.mulf %102, %105 : vector<32x128xf32>
    %c0_47 = arith.constant 0 : index
    %c0_48 = arith.constant 0 : index
    %107 = memref.load %arg1[%c0_47, %c0_48] : memref<6x16xf32, #tpu.memory_space<smem>>
    %c1_49 = arith.constant 1 : index
    %c0_50 = arith.constant 0 : index
    %108 = memref.load %arg1[%c1_49, %c0_50] : memref<6x16xf32, #tpu.memory_space<smem>>
    %109 = vector.broadcast %108 : f32 to vector<32x128xf32>
    %110 = vector.broadcast %107 : f32 to vector<32x128xf32>
    %111 = arith.select %15, %109, %110 : vector<32x128xi1>, vector<32x128xf32>
    %c2_51 = arith.constant 2 : index
    %c0_52 = arith.constant 0 : index
    %112 = memref.load %arg1[%c2_51, %c0_52] : memref<6x16xf32, #tpu.memory_space<smem>>
    %113 = vector.broadcast %112 : f32 to vector<32x128xf32>
    %114 = arith.select %17, %113, %111 : vector<32x128xi1>, vector<32x128xf32>
    %c3_53 = arith.constant 3 : index
    %c0_54 = arith.constant 0 : index
    %115 = memref.load %arg1[%c3_53, %c0_54] : memref<6x16xf32, #tpu.memory_space<smem>>
    %116 = vector.broadcast %115 : f32 to vector<32x128xf32>
    %117 = arith.select %19, %116, %114 : vector<32x128xi1>, vector<32x128xf32>
    %c4_55 = arith.constant 4 : index
    %c0_56 = arith.constant 0 : index
    %118 = memref.load %arg1[%c4_55, %c0_56] : memref<6x16xf32, #tpu.memory_space<smem>>
    %119 = vector.broadcast %118 : f32 to vector<32x128xf32>
    %120 = arith.select %21, %119, %117 : vector<32x128xi1>, vector<32x128xf32>
    %c5_57 = arith.constant 5 : index
    %c0_58 = arith.constant 0 : index
    %121 = memref.load %arg1[%c5_57, %c0_58] : memref<6x16xf32, #tpu.memory_space<smem>>
    %122 = vector.broadcast %121 : f32 to vector<32x128xf32>
    %123 = arith.select %23, %122, %120 : vector<32x128xi1>, vector<32x128xf32>
    %124 = arith.mulf %123, %7 : vector<32x128xf32>
    %c0_59 = arith.constant 0 : index
    %c1_60 = arith.constant 1 : index
    %125 = memref.load %arg1[%c0_59, %c1_60] : memref<6x16xf32, #tpu.memory_space<smem>>
    %c1_61 = arith.constant 1 : index
    %c1_62 = arith.constant 1 : index
    %126 = memref.load %arg1[%c1_61, %c1_62] : memref<6x16xf32, #tpu.memory_space<smem>>
    %127 = vector.broadcast %126 : f32 to vector<32x128xf32>
    %128 = vector.broadcast %125 : f32 to vector<32x128xf32>
    %129 = arith.select %15, %127, %128 : vector<32x128xi1>, vector<32x128xf32>
    %c2_63 = arith.constant 2 : index
    %c1_64 = arith.constant 1 : index
    %130 = memref.load %arg1[%c2_63, %c1_64] : memref<6x16xf32, #tpu.memory_space<smem>>
    %131 = vector.broadcast %130 : f32 to vector<32x128xf32>
    %132 = arith.select %17, %131, %129 : vector<32x128xi1>, vector<32x128xf32>
    %c3_65 = arith.constant 3 : index
    %c1_66 = arith.constant 1 : index
    %133 = memref.load %arg1[%c3_65, %c1_66] : memref<6x16xf32, #tpu.memory_space<smem>>
    %134 = vector.broadcast %133 : f32 to vector<32x128xf32>
    %135 = arith.select %19, %134, %132 : vector<32x128xi1>, vector<32x128xf32>
    %c4_67 = arith.constant 4 : index
    %c1_68 = arith.constant 1 : index
    %136 = memref.load %arg1[%c4_67, %c1_68] : memref<6x16xf32, #tpu.memory_space<smem>>
    %137 = vector.broadcast %136 : f32 to vector<32x128xf32>
    %138 = arith.select %21, %137, %135 : vector<32x128xi1>, vector<32x128xf32>
    %c5_69 = arith.constant 5 : index
    %c1_70 = arith.constant 1 : index
    %139 = memref.load %arg1[%c5_69, %c1_70] : memref<6x16xf32, #tpu.memory_space<smem>>
    %140 = vector.broadcast %139 : f32 to vector<32x128xf32>
    %141 = arith.select %23, %140, %138 : vector<32x128xi1>, vector<32x128xf32>
    %142 = arith.mulf %141, %10 : vector<32x128xf32>
    %143 = arith.addf %124, %142 : vector<32x128xf32>
    %c0_71 = arith.constant 0 : index
    %c2_72 = arith.constant 2 : index
    %144 = memref.load %arg1[%c0_71, %c2_72] : memref<6x16xf32, #tpu.memory_space<smem>>
    %c1_73 = arith.constant 1 : index
    %c2_74 = arith.constant 2 : index
    %145 = memref.load %arg1[%c1_73, %c2_74] : memref<6x16xf32, #tpu.memory_space<smem>>
    %146 = vector.broadcast %145 : f32 to vector<32x128xf32>
    %147 = vector.broadcast %144 : f32 to vector<32x128xf32>
    %148 = arith.select %15, %146, %147 : vector<32x128xi1>, vector<32x128xf32>
    %c2_75 = arith.constant 2 : index
    %c2_76 = arith.constant 2 : index
    %149 = memref.load %arg1[%c2_75, %c2_76] : memref<6x16xf32, #tpu.memory_space<smem>>
    %150 = vector.broadcast %149 : f32 to vector<32x128xf32>
    %151 = arith.select %17, %150, %148 : vector<32x128xi1>, vector<32x128xf32>
    %c3_77 = arith.constant 3 : index
    %c2_78 = arith.constant 2 : index
    %152 = memref.load %arg1[%c3_77, %c2_78] : memref<6x16xf32, #tpu.memory_space<smem>>
    %153 = vector.broadcast %152 : f32 to vector<32x128xf32>
    %154 = arith.select %19, %153, %151 : vector<32x128xi1>, vector<32x128xf32>
    %c4_79 = arith.constant 4 : index
    %c2_80 = arith.constant 2 : index
    %155 = memref.load %arg1[%c4_79, %c2_80] : memref<6x16xf32, #tpu.memory_space<smem>>
    %156 = vector.broadcast %155 : f32 to vector<32x128xf32>
    %157 = arith.select %21, %156, %154 : vector<32x128xi1>, vector<32x128xf32>
    %c5_81 = arith.constant 5 : index
    %c2_82 = arith.constant 2 : index
    %158 = memref.load %arg1[%c5_81, %c2_82] : memref<6x16xf32, #tpu.memory_space<smem>>
    %159 = vector.broadcast %158 : f32 to vector<32x128xf32>
    %160 = arith.select %23, %159, %157 : vector<32x128xi1>, vector<32x128xf32>
    %161 = arith.mulf %160, %13 : vector<32x128xf32>
    %162 = arith.addf %143, %161 : vector<32x128xf32>
    %c0_83 = arith.constant 0 : index
    %c3_84 = arith.constant 3 : index
    %163 = memref.load %arg1[%c0_83, %c3_84] : memref<6x16xf32, #tpu.memory_space<smem>>
    %c1_85 = arith.constant 1 : index
    %c3_86 = arith.constant 3 : index
    %164 = memref.load %arg1[%c1_85, %c3_86] : memref<6x16xf32, #tpu.memory_space<smem>>
    %165 = vector.broadcast %164 : f32 to vector<32x128xf32>
    %166 = vector.broadcast %163 : f32 to vector<32x128xf32>
    %167 = arith.select %15, %165, %166 : vector<32x128xi1>, vector<32x128xf32>
    %c2_87 = arith.constant 2 : index
    %c3_88 = arith.constant 3 : index
    %168 = memref.load %arg1[%c2_87, %c3_88] : memref<6x16xf32, #tpu.memory_space<smem>>
    %169 = vector.broadcast %168 : f32 to vector<32x128xf32>
    %170 = arith.select %17, %169, %167 : vector<32x128xi1>, vector<32x128xf32>
    %c3_89 = arith.constant 3 : index
    %c3_90 = arith.constant 3 : index
    %171 = memref.load %arg1[%c3_89, %c3_90] : memref<6x16xf32, #tpu.memory_space<smem>>
    %172 = vector.broadcast %171 : f32 to vector<32x128xf32>
    %173 = arith.select %19, %172, %170 : vector<32x128xi1>, vector<32x128xf32>
    %c4_91 = arith.constant 4 : index
    %c3_92 = arith.constant 3 : index
    %174 = memref.load %arg1[%c4_91, %c3_92] : memref<6x16xf32, #tpu.memory_space<smem>>
    %175 = vector.broadcast %174 : f32 to vector<32x128xf32>
    %176 = arith.select %21, %175, %173 : vector<32x128xi1>, vector<32x128xf32>
    %c5_93 = arith.constant 5 : index
    %c3_94 = arith.constant 3 : index
    %177 = memref.load %arg1[%c5_93, %c3_94] : memref<6x16xf32, #tpu.memory_space<smem>>
    %178 = vector.broadcast %177 : f32 to vector<32x128xf32>
    %179 = arith.select %23, %178, %176 : vector<32x128xi1>, vector<32x128xf32>
    %180 = arith.addf %162, %179 : vector<32x128xf32>
    %181 = arith.mulf %180, %106 : vector<32x128xf32>
    %c0_95 = arith.constant 0 : index
    %182 = arith.index_cast %1 : i32 to index
    %c0_96 = arith.constant 0 : index
    %183 = vector.load %arg4[%c0_95, %182, %c0_96] : memref<3x32x128xf32, #tpu.memory_space<vmem>>, vector<1x32x128xf32>
    %184 = vector.shape_cast %183 : vector<1x32x128xf32> to vector<32x128xf32>
    %185 = vector.shape_cast %181 : vector<32x128xf32> to vector<1x32x128xf32>
    tpu.vector_store %arg4[%c0_95, %182, %c0_96], %185 {strides = array<i32>} : memref<3x32x128xf32, #tpu.memory_space<vmem>>, vector<1x32x128xf32>,
    %c0_97 = arith.constant 0 : index
    %c4_98 = arith.constant 4 : index
    %186 = memref.load %arg1[%c0_97, %c4_98] : memref<6x16xf32, #tpu.memory_space<smem>>
    %c1_99 = arith.constant 1 : index
    %c4_100 = arith.constant 4 : index
    %187 = memref.load %arg1[%c1_99, %c4_100] : memref<6x16xf32, #tpu.memory_space<smem>>
    %188 = vector.broadcast %187 : f32 to vector<32x128xf32>
    %189 = vector.broadcast %186 : f32 to vector<32x128xf32>
    %190 = arith.select %15, %188, %189 : vector<32x128xi1>, vector<32x128xf32>
    %c2_101 = arith.constant 2 : index
    %c4_102 = arith.constant 4 : index
    %191 = memref.load %arg1[%c2_101, %c4_102] : memref<6x16xf32, #tpu.memory_space<smem>>
    %192 = vector.broadcast %191 : f32 to vector<32x128xf32>
    %193 = arith.select %17, %192, %190 : vector<32x128xi1>, vector<32x128xf32>
    %c3_103 = arith.constant 3 : index
    %c4_104 = arith.constant 4 : index
    %194 = memref.load %arg1[%c3_103, %c4_104] : memref<6x16xf32, #tpu.memory_space<smem>>
    %195 = vector.broadcast %194 : f32 to vector<32x128xf32>
    %196 = arith.select %19, %195, %193 : vector<32x128xi1>, vector<32x128xf32>
    %c4_105 = arith.constant 4 : index
    %c4_106 = arith.constant 4 : index
    %197 = memref.load %arg1[%c4_105, %c4_106] : memref<6x16xf32, #tpu.memory_space<smem>>
    %198 = vector.broadcast %197 : f32 to vector<32x128xf32>
    %199 = arith.select %21, %198, %196 : vector<32x128xi1>, vector<32x128xf32>
    %c5_107 = arith.constant 5 : index
    %c4_108 = arith.constant 4 : index
    %200 = memref.load %arg1[%c5_107, %c4_108] : memref<6x16xf32, #tpu.memory_space<smem>>
    %201 = vector.broadcast %200 : f32 to vector<32x128xf32>
    %202 = arith.select %23, %201, %199 : vector<32x128xi1>, vector<32x128xf32>
    %203 = arith.mulf %202, %7 : vector<32x128xf32>
    %c0_109 = arith.constant 0 : index
    %c5_110 = arith.constant 5 : index
    %204 = memref.load %arg1[%c0_109, %c5_110] : memref<6x16xf32, #tpu.memory_space<smem>>
    %c1_111 = arith.constant 1 : index
    %c5_112 = arith.constant 5 : index
    %205 = memref.load %arg1[%c1_111, %c5_112] : memref<6x16xf32, #tpu.memory_space<smem>>
    %206 = vector.broadcast %205 : f32 to vector<32x128xf32>
    %207 = vector.broadcast %204 : f32 to vector<32x128xf32>
    %208 = arith.select %15, %206, %207 : vector<32x128xi1>, vector<32x128xf32>
    %c2_113 = arith.constant 2 : index
    %c5_114 = arith.constant 5 : index
    %209 = memref.load %arg1[%c2_113, %c5_114] : memref<6x16xf32, #tpu.memory_space<smem>>
    %210 = vector.broadcast %209 : f32 to vector<32x128xf32>
    %211 = arith.select %17, %210, %208 : vector<32x128xi1>, vector<32x128xf32>
    %c3_115 = arith.constant 3 : index
    %c5_116 = arith.constant 5 : index
    %212 = memref.load %arg1[%c3_115, %c5_116] : memref<6x16xf32, #tpu.memory_space<smem>>
    %213 = vector.broadcast %212 : f32 to vector<32x128xf32>
    %214 = arith.select %19, %213, %211 : vector<32x128xi1>, vector<32x128xf32>
    %c4_117 = arith.constant 4 : index
    %c5_118 = arith.constant 5 : index
    %215 = memref.load %arg1[%c4_117, %c5_118] : memref<6x16xf32, #tpu.memory_space<smem>>
    %216 = vector.broadcast %215 : f32 to vector<32x128xf32>
    %217 = arith.select %21, %216, %214 : vector<32x128xi1>, vector<32x128xf32>
    %c5_119 = arith.constant 5 : index
    %c5_120 = arith.constant 5 : index
    %218 = memref.load %arg1[%c5_119, %c5_120] : memref<6x16xf32, #tpu.memory_space<smem>>
    %219 = vector.broadcast %218 : f32 to vector<32x128xf32>
    %220 = arith.select %23, %219, %217 : vector<32x128xi1>, vector<32x128xf32>
    %221 = arith.mulf %220, %10 : vector<32x128xf32>
    %222 = arith.addf %203, %221 : vector<32x128xf32>
    %c0_121 = arith.constant 0 : index
    %c6 = arith.constant 6 : index
    %223 = memref.load %arg1[%c0_121, %c6] : memref<6x16xf32, #tpu.memory_space<smem>>
    %c1_122 = arith.constant 1 : index
    %c6_123 = arith.constant 6 : index
    %224 = memref.load %arg1[%c1_122, %c6_123] : memref<6x16xf32, #tpu.memory_space<smem>>
    %225 = vector.broadcast %224 : f32 to vector<32x128xf32>
    %226 = vector.broadcast %223 : f32 to vector<32x128xf32>
    %227 = arith.select %15, %225, %226 : vector<32x128xi1>, vector<32x128xf32>
    %c2_124 = arith.constant 2 : index
    %c6_125 = arith.constant 6 : index
    %228 = memref.load %arg1[%c2_124, %c6_125] : memref<6x16xf32, #tpu.memory_space<smem>>
    %229 = vector.broadcast %228 : f32 to vector<32x128xf32>
    %230 = arith.select %17, %229, %227 : vector<32x128xi1>, vector<32x128xf32>
    %c3_126 = arith.constant 3 : index
    %c6_127 = arith.constant 6 : index
    %231 = memref.load %arg1[%c3_126, %c6_127] : memref<6x16xf32, #tpu.memory_space<smem>>
    %232 = vector.broadcast %231 : f32 to vector<32x128xf32>
    %233 = arith.select %19, %232, %230 : vector<32x128xi1>, vector<32x128xf32>
    %c4_128 = arith.constant 4 : index
    %c6_129 = arith.constant 6 : index
    %234 = memref.load %arg1[%c4_128, %c6_129] : memref<6x16xf32, #tpu.memory_space<smem>>
    %235 = vector.broadcast %234 : f32 to vector<32x128xf32>
    %236 = arith.select %21, %235, %233 : vector<32x128xi1>, vector<32x128xf32>
    %c5_130 = arith.constant 5 : index
    %c6_131 = arith.constant 6 : index
    %237 = memref.load %arg1[%c5_130, %c6_131] : memref<6x16xf32, #tpu.memory_space<smem>>
    %238 = vector.broadcast %237 : f32 to vector<32x128xf32>
    %239 = arith.select %23, %238, %236 : vector<32x128xi1>, vector<32x128xf32>
    %240 = arith.mulf %239, %13 : vector<32x128xf32>
    %241 = arith.addf %222, %240 : vector<32x128xf32>
    %c0_132 = arith.constant 0 : index
    %c7 = arith.constant 7 : index
    %242 = memref.load %arg1[%c0_132, %c7] : memref<6x16xf32, #tpu.memory_space<smem>>
    %c1_133 = arith.constant 1 : index
    %c7_134 = arith.constant 7 : index
    %243 = memref.load %arg1[%c1_133, %c7_134] : memref<6x16xf32, #tpu.memory_space<smem>>
    %244 = vector.broadcast %243 : f32 to vector<32x128xf32>
    %245 = vector.broadcast %242 : f32 to vector<32x128xf32>
    %246 = arith.select %15, %244, %245 : vector<32x128xi1>, vector<32x128xf32>
    %c2_135 = arith.constant 2 : index
    %c7_136 = arith.constant 7 : index
    %247 = memref.load %arg1[%c2_135, %c7_136] : memref<6x16xf32, #tpu.memory_space<smem>>
    %248 = vector.broadcast %247 : f32 to vector<32x128xf32>
    %249 = arith.select %17, %248, %246 : vector<32x128xi1>, vector<32x128xf32>
    %c3_137 = arith.constant 3 : index
    %c7_138 = arith.constant 7 : index
    %250 = memref.load %arg1[%c3_137, %c7_138] : memref<6x16xf32, #tpu.memory_space<smem>>
    %251 = vector.broadcast %250 : f32 to vector<32x128xf32>
    %252 = arith.select %19, %251, %249 : vector<32x128xi1>, vector<32x128xf32>
    %c4_139 = arith.constant 4 : index
    %c7_140 = arith.constant 7 : index
    %253 = memref.load %arg1[%c4_139, %c7_140] : memref<6x16xf32, #tpu.memory_space<smem>>
    %254 = vector.broadcast %253 : f32 to vector<32x128xf32>
    %255 = arith.select %21, %254, %252 : vector<32x128xi1>, vector<32x128xf32>
    %c5_141 = arith.constant 5 : index
    %c7_142 = arith.constant 7 : index
    %256 = memref.load %arg1[%c5_141, %c7_142] : memref<6x16xf32, #tpu.memory_space<smem>>
    %257 = vector.broadcast %256 : f32 to vector<32x128xf32>
    %258 = arith.select %23, %257, %255 : vector<32x128xi1>, vector<32x128xf32>
    %259 = arith.addf %241, %258 : vector<32x128xf32>
    %260 = arith.mulf %259, %106 : vector<32x128xf32>
    %c1_143 = arith.constant 1 : index
    %261 = arith.index_cast %1 : i32 to index
    %c0_144 = arith.constant 0 : index
    %262 = vector.load %arg4[%c1_143, %261, %c0_144] : memref<3x32x128xf32, #tpu.memory_space<vmem>>, vector<1x32x128xf32>
    %263 = vector.shape_cast %262 : vector<1x32x128xf32> to vector<32x128xf32>
    %264 = vector.shape_cast %260 : vector<32x128xf32> to vector<1x32x128xf32>
    tpu.vector_store %arg4[%c1_143, %261, %c0_144], %264 {strides = array<i32>} : memref<3x32x128xf32, #tpu.memory_space<vmem>>, vector<1x32x128xf32>,
    %c0_145 = arith.constant 0 : index
    %c8 = arith.constant 8 : index
    %265 = memref.load %arg1[%c0_145, %c8] : memref<6x16xf32, #tpu.memory_space<smem>>
    %c1_146 = arith.constant 1 : index
    %c8_147 = arith.constant 8 : index
    %266 = memref.load %arg1[%c1_146, %c8_147] : memref<6x16xf32, #tpu.memory_space<smem>>
    %267 = vector.broadcast %266 : f32 to vector<32x128xf32>
    %268 = vector.broadcast %265 : f32 to vector<32x128xf32>
    %269 = arith.select %15, %267, %268 : vector<32x128xi1>, vector<32x128xf32>
    %c2_148 = arith.constant 2 : index
    %c8_149 = arith.constant 8 : index
    %270 = memref.load %arg1[%c2_148, %c8_149] : memref<6x16xf32, #tpu.memory_space<smem>>
    %271 = vector.broadcast %270 : f32 to vector<32x128xf32>
    %272 = arith.select %17, %271, %269 : vector<32x128xi1>, vector<32x128xf32>
    %c3_150 = arith.constant 3 : index
    %c8_151 = arith.constant 8 : index
    %273 = memref.load %arg1[%c3_150, %c8_151] : memref<6x16xf32, #tpu.memory_space<smem>>
    %274 = vector.broadcast %273 : f32 to vector<32x128xf32>
    %275 = arith.select %19, %274, %272 : vector<32x128xi1>, vector<32x128xf32>
    %c4_152 = arith.constant 4 : index
    %c8_153 = arith.constant 8 : index
    %276 = memref.load %arg1[%c4_152, %c8_153] : memref<6x16xf32, #tpu.memory_space<smem>>
    %277 = vector.broadcast %276 : f32 to vector<32x128xf32>
    %278 = arith.select %21, %277, %275 : vector<32x128xi1>, vector<32x128xf32>
    %c5_154 = arith.constant 5 : index
    %c8_155 = arith.constant 8 : index
    %279 = memref.load %arg1[%c5_154, %c8_155] : memref<6x16xf32, #tpu.memory_space<smem>>
    %280 = vector.broadcast %279 : f32 to vector<32x128xf32>
    %281 = arith.select %23, %280, %278 : vector<32x128xi1>, vector<32x128xf32>
    %282 = arith.mulf %281, %7 : vector<32x128xf32>
    %c0_156 = arith.constant 0 : index
    %c9 = arith.constant 9 : index
    %283 = memref.load %arg1[%c0_156, %c9] : memref<6x16xf32, #tpu.memory_space<smem>>
    %c1_157 = arith.constant 1 : index
    %c9_158 = arith.constant 9 : index
    %284 = memref.load %arg1[%c1_157, %c9_158] : memref<6x16xf32, #tpu.memory_space<smem>>
    %285 = vector.broadcast %284 : f32 to vector<32x128xf32>
    %286 = vector.broadcast %283 : f32 to vector<32x128xf32>
    %287 = arith.select %15, %285, %286 : vector<32x128xi1>, vector<32x128xf32>
    %c2_159 = arith.constant 2 : index
    %c9_160 = arith.constant 9 : index
    %288 = memref.load %arg1[%c2_159, %c9_160] : memref<6x16xf32, #tpu.memory_space<smem>>
    %289 = vector.broadcast %288 : f32 to vector<32x128xf32>
    %290 = arith.select %17, %289, %287 : vector<32x128xi1>, vector<32x128xf32>
    %c3_161 = arith.constant 3 : index
    %c9_162 = arith.constant 9 : index
    %291 = memref.load %arg1[%c3_161, %c9_162] : memref<6x16xf32, #tpu.memory_space<smem>>
    %292 = vector.broadcast %291 : f32 to vector<32x128xf32>
    %293 = arith.select %19, %292, %290 : vector<32x128xi1>, vector<32x128xf32>
    %c4_163 = arith.constant 4 : index
    %c9_164 = arith.constant 9 : index
    %294 = memref.load %arg1[%c4_163, %c9_164] : memref<6x16xf32, #tpu.memory_space<smem>>
    %295 = vector.broadcast %294 : f32 to vector<32x128xf32>
    %296 = arith.select %21, %295, %293 : vector<32x128xi1>, vector<32x128xf32>
    %c5_165 = arith.constant 5 : index
    %c9_166 = arith.constant 9 : index
    %297 = memref.load %arg1[%c5_165, %c9_166] : memref<6x16xf32, #tpu.memory_space<smem>>
    %298 = vector.broadcast %297 : f32 to vector<32x128xf32>
    %299 = arith.select %23, %298, %296 : vector<32x128xi1>, vector<32x128xf32>
    %300 = arith.mulf %299, %10 : vector<32x128xf32>
    %301 = arith.addf %282, %300 : vector<32x128xf32>
    %c0_167 = arith.constant 0 : index
    %c10 = arith.constant 10 : index
    %302 = memref.load %arg1[%c0_167, %c10] : memref<6x16xf32, #tpu.memory_space<smem>>
    %c1_168 = arith.constant 1 : index
    %c10_169 = arith.constant 10 : index
    %303 = memref.load %arg1[%c1_168, %c10_169] : memref<6x16xf32, #tpu.memory_space<smem>>
    %304 = vector.broadcast %303 : f32 to vector<32x128xf32>
    %305 = vector.broadcast %302 : f32 to vector<32x128xf32>
    %306 = arith.select %15, %304, %305 : vector<32x128xi1>, vector<32x128xf32>
    %c2_170 = arith.constant 2 : index
    %c10_171 = arith.constant 10 : index
    %307 = memref.load %arg1[%c2_170, %c10_171] : memref<6x16xf32, #tpu.memory_space<smem>>
    %308 = vector.broadcast %307 : f32 to vector<32x128xf32>
    %309 = arith.select %17, %308, %306 : vector<32x128xi1>, vector<32x128xf32>
    %c3_172 = arith.constant 3 : index
    %c10_173 = arith.constant 10 : index
    %310 = memref.load %arg1[%c3_172, %c10_173] : memref<6x16xf32, #tpu.memory_space<smem>>
    %311 = vector.broadcast %310 : f32 to vector<32x128xf32>
    %312 = arith.select %19, %311, %309 : vector<32x128xi1>, vector<32x128xf32>
    %c4_174 = arith.constant 4 : index
    %c10_175 = arith.constant 10 : index
    %313 = memref.load %arg1[%c4_174, %c10_175] : memref<6x16xf32, #tpu.memory_space<smem>>
    %314 = vector.broadcast %313 : f32 to vector<32x128xf32>
    %315 = arith.select %21, %314, %312 : vector<32x128xi1>, vector<32x128xf32>
    %c5_176 = arith.constant 5 : index
    %c10_177 = arith.constant 10 : index
    %316 = memref.load %arg1[%c5_176, %c10_177] : memref<6x16xf32, #tpu.memory_space<smem>>
    %317 = vector.broadcast %316 : f32 to vector<32x128xf32>
    %318 = arith.select %23, %317, %315 : vector<32x128xi1>, vector<32x128xf32>
    %319 = arith.mulf %318, %13 : vector<32x128xf32>
    %320 = arith.addf %301, %319 : vector<32x128xf32>
    %c0_178 = arith.constant 0 : index
    %c11 = arith.constant 11 : index
    %321 = memref.load %arg1[%c0_178, %c11] : memref<6x16xf32, #tpu.memory_space<smem>>
    %c1_179 = arith.constant 1 : index
    %c11_180 = arith.constant 11 : index
    %322 = memref.load %arg1[%c1_179, %c11_180] : memref<6x16xf32, #tpu.memory_space<smem>>
    %323 = vector.broadcast %322 : f32 to vector<32x128xf32>
    %324 = vector.broadcast %321 : f32 to vector<32x128xf32>
    %325 = arith.select %15, %323, %324 : vector<32x128xi1>, vector<32x128xf32>
    %c2_181 = arith.constant 2 : index
    %c11_182 = arith.constant 11 : index
    %326 = memref.load %arg1[%c2_181, %c11_182] : memref<6x16xf32, #tpu.memory_space<smem>>
    %327 = vector.broadcast %326 : f32 to vector<32x128xf32>
    %328 = arith.select %17, %327, %325 : vector<32x128xi1>, vector<32x128xf32>
    %c3_183 = arith.constant 3 : index
    %c11_184 = arith.constant 11 : index
    %329 = memref.load %arg1[%c3_183, %c11_184] : memref<6x16xf32, #tpu.memory_space<smem>>
    %330 = vector.broadcast %329 : f32 to vector<32x128xf32>
    %331 = arith.select %19, %330, %328 : vector<32x128xi1>, vector<32x128xf32>
    %c4_185 = arith.constant 4 : index
    %c11_186 = arith.constant 11 : index
    %332 = memref.load %arg1[%c4_185, %c11_186] : memref<6x16xf32, #tpu.memory_space<smem>>
    %333 = vector.broadcast %332 : f32 to vector<32x128xf32>
    %334 = arith.select %21, %333, %331 : vector<32x128xi1>, vector<32x128xf32>
    %c5_187 = arith.constant 5 : index
    %c11_188 = arith.constant 11 : index
    %335 = memref.load %arg1[%c5_187, %c11_188] : memref<6x16xf32, #tpu.memory_space<smem>>
    %336 = vector.broadcast %335 : f32 to vector<32x128xf32>
    %337 = arith.select %23, %336, %334 : vector<32x128xi1>, vector<32x128xf32>
    %338 = arith.addf %320, %337 : vector<32x128xf32>
    %339 = arith.mulf %338, %106 : vector<32x128xf32>
    %c2_189 = arith.constant 2 : index
    %340 = arith.index_cast %1 : i32 to index
    %c0_190 = arith.constant 0 : index
    %341 = vector.load %arg4[%c2_189, %340, %c0_190] : memref<3x32x128xf32, #tpu.memory_space<vmem>>, vector<1x32x128xf32>
    %342 = vector.shape_cast %341 : vector<1x32x128xf32> to vector<32x128xf32>
    %343 = vector.shape_cast %339 : vector<32x128xf32> to vector<1x32x128xf32>
    tpu.vector_store %arg4[%c2_189, %340, %c0_190], %343 {strides = array<i32>} : memref<3x32x128xf32, #tpu.memory_space<vmem>>, vector<1x32x128xf32>,
    %c1_i32_191 = arith.constant 1 : i32
    return
  }
  func.func @transform_0(%arg0: i32) -> (i32, i32) {
    %c0_i32 = arith.constant 0 : i32
    %c0_i32_0 = arith.constant 0 : i32
    %c0_i32_1 = arith.constant 0 : i32
    return %c0_i32, %c0_i32_0 : i32, i32
  }
  func.func @transform_1(%arg0: i32) -> (i32, i32) {
    %c0_i32 = arith.constant 0 : i32
    %c0_i32_0 = arith.constant 0 : i32
    return %arg0, %c0_i32 : i32, i32
  }
  func.func @transform_2(%arg0: i32) -> (i32, i32, i32) {
    %c0_i32 = arith.constant 0 : i32
    %c0_i32_0 = arith.constant 0 : i32
    %c0_i32_1 = arith.constant 0 : i32
    return %c0_i32, %arg0, %c0_i32_0 : i32, i32, i32
  }
  func.func @transform_3(%arg0: i32) -> (i32, i32, i32) {
    %c0_i32 = arith.constant 0 : i32
    %c0_i32_0 = arith.constant 0 : i32
    %c0_i32_1 = arith.constant 0 : i32
    return %c0_i32, %arg0, %c0_i32_0 : i32, i32, i32
  }
}

</mosaic_0001>

<llo_original>
// kernel: warp_proj_forward.1
$region0: #{warp_proj_forward.1}
  #allocation0 [shape = 'u32[]', space=smem, size = 0x4, offset = 0x4, fixed_abs, tag = 'smem constant byte address 0x4 - core index']
  #allocation1 [shape = 'u32[144,128]{1,0:T(1,128)}', space=vmem, size = 0x12000, scoped, tag = 'internal scratch']
  %s0 = inlined_call_operand.vmem [shape: f32[6,16], index: 0, kind: input, shape index: {}]
  %s1 = inlined_call_operand.vmem [shape: s8[32,128], index: 1, kind: input, shape index: {}]
  %s2 = inlined_call_operand.vmem [shape: f32[3,32,128], index: 2, kind: input, shape index: {}]
  %s3 = inlined_call_operand.vmem [shape: f32[3,32,128], index: 3, kind: output, shape index: {}]
  %s4 = sld [smem:[#allocation0]]
  $region26: #{warp_proj_forward.1} parent=0
    _
  %s6 = ssub.s32 1, %s4
  %s7 = scalar_select 0, %s6, %s4
  $region1: #{warp_proj_forward.1} parent=0
    #allocation2 [shape = 'u8[4096]{0}', space=smem, size = 0x1000, scoped, tag = 'input window, operand 0, single buffered']
    #allocation3 [shape = 's32[1]{0}', space=sflag, size = 0x4, scoped, tag = 'scoped memory for warp_proj_forward.1']
    %8 = vsyncpa [#allocation3], 0
    // Predicated region
    $region2: #{warp_proj_forward.1} parent=1 // pred_check
      _
    $region3: #{warp_proj_forward.1} parent=1 // pred_check_branch
      %10 = sbr.rel (0) target = $region5
    $region4: #{warp_proj_forward.1} parent=1 // pred_region
      %s12 = ssub.s32 128, 128
      %13 = vsyncadd [#allocation3], %s12
      %s15 = sshll.u32 %s0, 4
      %s16 = int_to_ptr.vmem [resolvable:$true] %s15
      %18 = dma.vmem_to_smem %s16, 128, [#allocation2], [#allocation3]
    $region5: #{warp_proj_forward.1} parent=1 // pred_fallthru
      _
    // Predicated region
    $region6: #{warp_proj_forward.1} parent=1 // pred_check
      _
    $region7: #{warp_proj_forward.1} parent=1 // pred_check_branch
      %20 = sbr.rel (0) target = $region9
    $region8: #{warp_proj_forward.1} parent=1 // pred_region
      _
    $region9: #{warp_proj_forward.1} parent=1 // pred_fallthru
      _
    // Predicated region
    $region10: #{warp_proj_forward.1} parent=1 // pred_check
      _
    $region11: #{warp_proj_forward.1} parent=1 // pred_check_branch
      %22 = sbr.rel (0) target = $region13
    $region12: #{warp_proj_forward.1} parent=1 // pred_region
      _
    $region13: #{warp_proj_forward.1} parent=1 // pred_fallthru
      _
    // Predicated region
    $region14: #{warp_proj_forward.1} parent=1 // pred_check
      _
    $region15: #{warp_proj_forward.1} parent=1 // pred_check_branch
      %24 = sbr.rel (0) target = $region17
    $region16: #{warp_proj_forward.1} parent=1 // pred_region
      %25 = dma.done [#allocation3], 128
    $region17: #{warp_proj_forward.1} parent=1 // pred_fallthru
      _
    %26 = sfence
    %v27 = vld [vmem:[%s1] sm:$0xff]
    %v28 = vunpack.c.0.s8 %v27
    %v29 = vunpack.c.1.s8 %v27
    %v30 = vunpack.c.2.s8 %v27
    %v31 = vunpack.c.3.s8 %v27
    %v32 = vld [vmem:[%s2] sm:$0xff]
    %v33 = vld [vmem:[%s2 + $0x8] sm:$0xff]
    %v34 = vld [vmem:[%s2 + $0x10] sm:$0xff]
    %v35 = vld [vmem:[%s2 + $0x18] sm:$0xff]
    %s36 = sadd.s32 0, 32
    %s37 = scalar_lea.vmem %s2, %s36
    %v38 = vld [vmem:[%s37] sm:$0xff]
    %v39 = vld [vmem:[%s37 + $0x8] sm:$0xff]
    %v40 = vld [vmem:[%s37 + $0x10] sm:$0xff]
    %v41 = vld [vmem:[%s37 + $0x18] sm:$0xff]
    %s42 = sadd.s32 0, 64
    %s43 = scalar_lea.vmem %s2, %s42
    %v44 = vld [vmem:[%s43] sm:$0xff]
    %v45 = vld [vmem:[%s43 + $0x8] sm:$0xff]
    %v46 = vld [vmem:[%s43 + $0x10] sm:$0xff]
    %v47 = vld [vmem:[%s43 + $0x18] sm:$0xff]
    %vm48 = vcmp.ge.s32.totalorder %v28, 1
    %vm49 = vcmp.ge.s32.totalorder %v29, 1
    %vm50 = vcmp.ge.s32.totalorder %v30, 1
    %vm51 = vcmp.ge.s32.totalorder %v31, 1
    %vm52 = vcmp.ge.s32.totalorder %v28, 2
    %vm53 = vcmp.ge.s32.totalorder %v29, 2
    %vm54 = vcmp.ge.s32.totalorder %v30, 2
    %vm55 = vcmp.ge.s32.totalorder %v31, 2
    %vm56 = vcmp.ge.s32.totalorder %v28, 3
    %vm57 = vcmp.ge.s32.totalorder %v29, 3
    %vm58 = vcmp.ge.s32.totalorder %v30, 3
    %vm59 = vcmp.ge.s32.totalorder %v31, 3
    %vm60 = vcmp.ge.s32.totalorder %v28, 4
    %vm61 = vcmp.ge.s32.totalorder %v29, 4
    %vm62 = vcmp.ge.s32.totalorder %v30, 4
    %vm63 = vcmp.ge.s32.totalorder %v31, 4
    %vm64 = vcmp.ge.s32.totalorder %v28, 5
    %vm65 = vcmp.ge.s32.totalorder %v29, 5
    %vm66 = vcmp.ge.s32.totalorder %v30, 5
    %vm67 = vcmp.ge.s32.totalorder %v31, 5
    %s68 = sld [smem:[#allocation2 + $0xc]]
    %s69 = sld [smem:[#allocation2 + $0x8c]]
    %v70 = vstv %s69
    %v71 = vstv %s68
    %v72 = vsel %vm48, %v70, %v71
    %v73 = vsel %vm49, %v70, %v71
    %v74 = vsel %vm50, %v70, %v71
    %v75 = vsel %vm51, %v70, %v71
    %s76 = sld [smem:[#allocation2 + $0x10c]]
    %v77 = vstv %s76
    %v78 = vsel %vm52, %v77, %v72
    %v79 = vsel %vm53, %v77, %v73
    %v80 = vsel %vm54, %v77, %v74
    %v81 = vsel %vm55, %v77, %v75
    %s82 = sld [smem:[#allocation2 + $0x18c]]
    %v83 = vstv %s82
    %v84 = vsel %vm56, %v83, %v78
    %v85 = vsel %vm57, %v83, %v79
    %v86 = vsel %vm58, %v83, %v80
    %v87 = vsel %vm59, %v83, %v81
    %s88 = sld [smem:[#allocation2 + $0x20c]]
    %v89 = vstv %s88
    %v90 = vsel %vm60, %v89, %v84
    %v91 = vsel %vm61, %v89, %v85
    %v92 = vsel %vm62, %v89, %v86
    %v93 = vsel %vm63, %v89, %v87
    %s94 = sld [smem:[#allocation2 + $0x28c]]
    %v95 = vstv %s94
    %v96 = vsel %vm64, %v95, %v90
    %v97 = vsel %vm65, %v95, %v91
    %v98 = vsel %vm66, %v95, %v92
    %v99 = vsel %vm67, %v95, %v93
    %v100 = vmul.f32 %v96, %v32
    %v101 = vmul.f32 %v97, %v33
    %v102 = vmul.f32 %v98, %v34
    %v103 = vmul.f32 %v99, %v35
    %s104 = sld [smem:[#allocation2 + $0xd]]
    %s105 = sld [smem:[#allocation2 + $0x8d]]
    %v106 = vstv %s105
    %v107 = vstv %s104
    %v108 = vsel %vm48, %v106, %v107
    %v109 = vsel %vm49, %v106, %v107
    %v110 = vsel %vm50, %v106, %v107
    %v111 = vsel %vm51, %v106, %v107
    %s112 = sld [smem:[#allocation2 + $0x10d]]
    %v113 = vstv %s112
    %v114 = vsel %vm52, %v113, %v108
    %v115 = vsel %vm53, %v113, %v109
    %v116 = vsel %vm54, %v113, %v110
    %v117 = vsel %vm55, %v113, %v111
    %s118 = sld [smem:[#allocation2 + $0x18d]]
    %v119 = vstv %s118
    %v120 = vsel %vm56, %v119, %v114
    %v121 = vsel %vm57, %v119, %v115
    %v122 = vsel %vm58, %v119, %v116
    %v123 = vsel %vm59, %v119, %v117
    %s124 = sld [smem:[#allocation2 + $0x20d]]
    %v125 = vstv %s124
    %v126 = vsel %vm60, %v125, %v120
    %v127 = vsel %vm61, %v125, %v121
    %v128 = vsel %vm62, %v125, %v122
    %v129 = vsel %vm63, %v125, %v123
    %s130 = sld [smem:[#allocation2 + $0x28d]]
    %v131 = vstv %s130
    %v132 = vsel %vm64, %v131, %v126
    %v133 = vsel %vm65, %v131, %v127
    %v134 = vsel %vm66, %v131, %v128
    %v135 = vsel %vm67, %v131, %v129
    %v136 = vmul.f32 %v132, %v38
    %v137 = vmul.f32 %v133, %v39
    %v138 = vmul.f32 %v134, %v40
    %v139 = vmul.f32 %v135, %v41
    %v140 = vadd.f32 %v100, %v136
    %v141 = vadd.f32 %v101, %v137
    %v142 = vadd.f32 %v102, %v138
    %v143 = vadd.f32 %v103, %v139
    %s144 = sld [smem:[#allocation2 + $0xe]]
    %s145 = sld [smem:[#allocation2 + $0x8e]]
    %v146 = vstv %s145
    %v147 = vstv %s144
    %v148 = vsel %vm48, %v146, %v147
    %v149 = vsel %vm49, %v146, %v147
    %v150 = vsel %vm50, %v146, %v147
    %v151 = vsel %vm51, %v146, %v147
    %s152 = sld [smem:[#allocation2 + $0x10e]]
    %v153 = vstv %s152
    %v154 = vsel %vm52, %v153, %v148
    %v155 = vsel %vm53, %v153, %v149
    %v156 = vsel %vm54, %v153, %v150
    %v157 = vsel %vm55, %v153, %v151
    %s158 = sld [smem:[#allocation2 + $0x18e]]
    %v159 = vstv %s158
    %v160 = vsel %vm56, %v159, %v154
    %v161 = vsel %vm57, %v159, %v155
    %v162 = vsel %vm58, %v159, %v156
    %v163 = vsel %vm59, %v159, %v157
    %s164 = sld [smem:[#allocation2 + $0x20e]]
    %v165 = vstv %s164
    %v166 = vsel %vm60, %v165, %v160
    %v167 = vsel %vm61, %v165, %v161
    %v168 = vsel %vm62, %v165, %v162
    %v169 = vsel %vm63, %v165, %v163
    %s170 = sld [smem:[#allocation2 + $0x28e]]
    %v171 = vstv %s170
    %v172 = vsel %vm64, %v171, %v166
    %v173 = vsel %vm65, %v171, %v167
    %v174 = vsel %vm66, %v171, %v168
    %v175 = vsel %vm67, %v171, %v169
    %v176 = vmul.f32 %v172, %v44
    %v177 = vmul.f32 %v173, %v45
    %v178 = vmul.f32 %v174, %v46
    %v179 = vmul.f32 %v175, %v47
    %v180 = vadd.f32 %v140, %v176
    %v181 = vadd.f32 %v141, %v177
    %v182 = vadd.f32 %v142, %v178
    %v183 = vadd.f32 %v143, %v179
    %s184 = sld [smem:[#allocation2 + $0xf]]
    %s185 = sld [smem:[#allocation2 + $0x8f]]
    %v186 = vstv %s185
    %v187 = vstv %s184
    %v188 = vsel %vm48, %v186, %v187
    %v189 = vsel %vm49, %v186, %v187
    %v190 = vsel %vm50, %v186, %v187
    %v191 = vsel %vm51, %v186, %v187
    %s192 = sld [smem:[#allocation2 + $0x10f]]
    %v193 = vstv %s192
    %v194 = vsel %vm52, %v193, %v188
    %v195 = vsel %vm53, %v193, %v189
    %v196 = vsel %vm54, %v193, %v190
    %v197 = vsel %vm55, %v193, %v191
    %s198 = sld [smem:[#allocation2 + $0x18f]]
    %v199 = vstv %s198
    %v200 = vsel %vm56, %v199, %v194
    %v201 = vsel %vm57, %v199, %v195
    %v202 = vsel %vm58, %v199, %v196
    %v203 = vsel %vm59, %v199, %v197
    %s204 = sld [smem:[#allocation2 + $0x20f]]
    %v205 = vstv %s204
    %v206 = vsel %vm60, %v205, %v200
    %v207 = vsel %vm61, %v205, %v201
    %v208 = vsel %vm62, %v205, %v202
    %v209 = vsel %vm63, %v205, %v203
    %s210 = sld [smem:[#allocation2 + $0x28f]]
    %v211 = vstv %s210
    %v212 = vsel %vm64, %v211, %v206
    %v213 = vsel %vm65, %v211, %v207
    %v214 = vsel %vm66, %v211, %v208
    %v215 = vsel %vm67, %v211, %v209
    %v216 = vadd.f32 %v180, %v212
    %v217 = vadd.f32 %v181, %v213
    %v218 = vadd.f32 %v182, %v214
    %v219 = vadd.f32 %v183, %v215
    %vm220 = vcmp.eq.f32.partialorder %v216, 0.0
    %vm221 = vcmp.eq.f32.partialorder %v217, 0.0
    %vm222 = vcmp.eq.f32.partialorder %v218, 0.0
    %vm223 = vcmp.eq.f32.partialorder %v219, 0.0
    %v224 = vsel %vm220, 1.0, %v216
    %v225 = vsel %vm221, 1.0, %v217
    %v226 = vsel %vm222, 1.0, %v218
    %v227 = vsel %vm223, 1.0, %v219
    %v228 = vrcp.pop %v224
    %v229 = vrcp.pop %v225
    %v230 = vrcp.pop %v226
    %v231 = vrcp.pop %v227
    %v232 = vmul.f32 %v224, %v228
    %v233 = vmul.f32 %v225, %v229
    %v234 = vmul.f32 %v226, %v230
    %v235 = vmul.f32 %v227, %v231
    %v236 = vsub.f32 2.0, %v232
    %v237 = vsub.f32 2.0, %v233
    %v238 = vsub.f32 2.0, %v234
    %v239 = vsub.f32 2.0, %v235
    %v240 = vmul.f32 %v228, %v236
    %v241 = vmul.f32 %v229, %v237
    %v242 = vmul.f32 %v230, %v238
    %v243 = vmul.f32 %v231, %v239
    %s244 = sld [smem:[#allocation2]]
    %s245 = sld [smem:[#allocation2 + $0x80]]
    %v246 = vstv %s245
    %v247 = vstv %s244
    %v248 = vsel %vm48, %v246, %v247
    %v249 = vsel %vm49, %v246, %v247
    %v250 = vsel %vm50, %v246, %v247
    %v251 = vsel %vm51, %v246, %v247
    %s252 = sld [smem:[#allocation2 + $0x100]]
    %v253 = vstv %s252
    %v254 = vsel %vm52, %v253, %v248
    %v255 = vsel %vm53, %v253, %v249
    %v256 = vsel %vm54, %v253, %v250
    %v257 = vsel %vm55, %v253, %v251
    %s258 = sld [smem:[#allocation2 + $0x180]]
    %v259 = vstv %s258
    %v260 = vsel %vm56, %v259, %v254
    %v261 = vsel %vm57, %v259, %v255
    %v262 = vsel %vm58, %v259, %v256
    %v263 = vsel %vm59, %v259, %v257
    %s264 = sld [smem:[#allocation2 + $0x200]]
    %v265 = vstv %s264
    %v266 = vsel %vm60, %v265, %v260
    %v267 = vsel %vm61, %v265, %v261
    %v268 = vsel %vm62, %v265, %v262
    %v269 = vsel %vm63, %v265, %v263
    %s270 = sld [smem:[#allocation2 + $0x280]]
    %v271 = vstv %s270
    %v272 = vsel %vm64, %v271, %v266
    %v273 = vsel %vm65, %v271, %v267
    %v274 = vsel %vm66, %v271, %v268
    %v275 = vsel %vm67, %v271, %v269
    %v276 = vmul.f32 %v272, %v32
    %v277 = vmul.f32 %v273, %v33
    %v278 = vmul.f32 %v274, %v34
    %v279 = vmul.f32 %v275, %v35
    %s280 = sld [smem:[#allocation2 + $0x1]]
    %s281 = sld [smem:[#allocation2 + $0x81]]
    %v282 = vstv %s281
    %v283 = vstv %s280
    %v284 = vsel %vm48, %v282, %v283
    %v285 = vsel %vm49, %v282, %v283
    %v286 = vsel %vm50, %v282, %v283
    %v287 = vsel %vm51, %v282, %v283
    %s288 = sld [smem:[#allocation2 + $0x101]]
    %v289 = vstv %s288
    %v290 = vsel %vm52, %v289, %v284
    %v291 = vsel %vm53, %v289, %v285
    %v292 = vsel %vm54, %v289, %v286
    %v293 = vsel %vm55, %v289, %v287
    %s294 = sld [smem:[#allocation2 + $0x181]]
    %v295 = vstv %s294
    %v296 = vsel %vm56, %v295, %v290
    %v297 = vsel %vm57, %v295, %v291
    %v298 = vsel %vm58, %v295, %v292
    %v299 = vsel %vm59, %v295, %v293
    %s300 = sld [smem:[#allocation2 + $0x201]]
    %v301 = vstv %s300
    %v302 = vsel %vm60, %v301, %v296
    %v303 = vsel %vm61, %v301, %v297
    %v304 = vsel %vm62, %v301, %v298
    %v305 = vsel %vm63, %v301, %v299
    %s306 = sld [smem:[#allocation2 + $0x281]]
    %v307 = vstv %s306
    %v308 = vsel %vm64, %v307, %v302
    %v309 = vsel %vm65, %v307, %v303
    %v310 = vsel %vm66, %v307, %v304
    %v311 = vsel %vm67, %v307, %v305
    %v312 = vmul.f32 %v308, %v38
    %v313 = vmul.f32 %v309, %v39
    %v314 = vmul.f32 %v310, %v40
    %v315 = vmul.f32 %v311, %v41
    %v316 = vadd.f32 %v276, %v312
    %v317 = vadd.f32 %v277, %v313
    %v318 = vadd.f32 %v278, %v314
    %v319 = vadd.f32 %v279, %v315
    %s320 = sld [smem:[#allocation2 + $0x2]]
    %s321 = sld [smem:[#allocation2 + $0x82]]
    %v322 = vstv %s321
    %v323 = vstv %s320
    %v324 = vsel %vm48, %v322, %v323
    %v325 = vsel %vm49, %v322, %v323
    %v326 = vsel %vm50, %v322, %v323
    %v327 = vsel %vm51, %v322, %v323
    %s328 = sld [smem:[#allocation2 + $0x102]]
    %v329 = vstv %s328
    %v330 = vsel %vm52, %v329, %v324
    %v331 = vsel %vm53, %v329, %v325
    %v332 = vsel %vm54, %v329, %v326
    %v333 = vsel %vm55, %v329, %v327
    %s334 = sld [smem:[#allocation2 + $0x182]]
    %v335 = vstv %s334
    %v336 = vsel %vm56, %v335, %v330
    %v337 = vsel %vm57, %v335, %v331
    %v338 = vsel %vm58, %v335, %v332
    %v339 = vsel %vm59, %v335, %v333
    %s340 = sld [smem:[#allocation2 + $0x202]]
    %v341 = vstv %s340
    %v342 = vsel %vm60, %v341, %v336
    %v343 = vsel %vm61, %v341, %v337
    %v344 = vsel %vm62, %v341, %v338
    %v345 = vsel %vm63, %v341, %v339
    %s346 = sld [smem:[#allocation2 + $0x282]]
    %v347 = vstv %s346
    %v348 = vsel %vm64, %v347, %v342
    %v349 = vsel %vm65, %v347, %v343
    %v350 = vsel %vm66, %v347, %v344
    %v351 = vsel %vm67, %v347, %v345
    %v352 = vmul.f32 %v348, %v44
    %v353 = vmul.f32 %v349, %v45
    %v354 = vmul.f32 %v350, %v46
    %v355 = vmul.f32 %v351, %v47
    %v356 = vadd.f32 %v316, %v352
    %v357 = vadd.f32 %v317, %v353
    %v358 = vadd.f32 %v318, %v354
    %v359 = vadd.f32 %v319, %v355
    %s360 = sld [smem:[#allocation2 + $0x3]]
    %s361 = sld [smem:[#allocation2 + $0x83]]
    %v362 = vstv %s361
    %v363 = vstv %s360
    %v364 = vsel %vm48, %v362, %v363
    %v365 = vsel %vm49, %v362, %v363
    %v366 = vsel %vm50, %v362, %v363
    %v367 = vsel %vm51, %v362, %v363
    %s368 = sld [smem:[#allocation2 + $0x103]]
    %v369 = vstv %s368
    %v370 = vsel %vm52, %v369, %v364
    %v371 = vsel %vm53, %v369, %v365
    %v372 = vsel %vm54, %v369, %v366
    %v373 = vsel %vm55, %v369, %v367
    %s374 = sld [smem:[#allocation2 + $0x183]]
    %v375 = vstv %s374
    %v376 = vsel %vm56, %v375, %v370
    %v377 = vsel %vm57, %v375, %v371
    %v378 = vsel %vm58, %v375, %v372
    %v379 = vsel %vm59, %v375, %v373
    %s380 = sld [smem:[#allocation2 + $0x203]]
    %v381 = vstv %s380
    %v382 = vsel %vm60, %v381, %v376
    %v383 = vsel %vm61, %v381, %v377
    %v384 = vsel %vm62, %v381, %v378
    %v385 = vsel %vm63, %v381, %v379
    %s386 = sld [smem:[#allocation2 + $0x283]]
    %v387 = vstv %s386
    %v388 = vsel %vm64, %v387, %v382
    %v389 = vsel %vm65, %v387, %v383
    %v390 = vsel %vm66, %v387, %v384
    %v391 = vsel %vm67, %v387, %v385
    %v392 = vadd.f32 %v356, %v388
    %v393 = vadd.f32 %v357, %v389
    %v394 = vadd.f32 %v358, %v390
    %v395 = vadd.f32 %v359, %v391
    %v396 = vmul.f32 %v392, %v240
    %v397 = vmul.f32 %v393, %v241
    %v398 = vmul.f32 %v394, %v242
    %v399 = vmul.f32 %v395, %v243
    %400 = vst [vmem:[%s3] sm:$0xff] %v396
    %401 = vst [vmem:[%s3 + $0x8] sm:$0xff] %v397
    %402 = vst [vmem:[%s3 + $0x10] sm:$0xff] %v398
    %403 = vst [vmem:[%s3 + $0x18] sm:$0xff] %v399
    %s404 = sld [smem:[#allocation2 + $0x4]]
    %s405 = sld [smem:[#allocation2 + $0x84]]
    %v406 = vstv %s405
    %v407 = vstv %s404
    %v408 = vsel %vm48, %v406, %v407
    %v409 = vsel %vm49, %v406, %v407
    %v410 = vsel %vm50, %v406, %v407
    %v411 = vsel %vm51, %v406, %v407
    %s412 = sld [smem:[#allocation2 + $0x104]]
    %v413 = vstv %s412
    %v414 = vsel %vm52, %v413, %v408
    %v415 = vsel %vm53, %v413, %v409
    %v416 = vsel %vm54, %v413, %v410
    %v417 = vsel %vm55, %v413, %v411
    %s418 = sld [smem:[#allocation2 + $0x184]]
    %v419 = vstv %s418
    %v420 = vsel %vm56, %v419, %v414
    %v421 = vsel %vm57, %v419, %v415
    %v422 = vsel %vm58, %v419, %v416
    %v423 = vsel %vm59, %v419, %v417
    %s424 = sld [smem:[#allocation2 + $0x204]]
    %v425 = vstv %s424
    %v426 = vsel %vm60, %v425, %v420
    %v427 = vsel %vm61, %v425, %v421
    %v428 = vsel %vm62, %v425, %v422
    %v429 = vsel %vm63, %v425, %v423
    %s430 = sld [smem:[#allocation2 + $0x284]]
    %v431 = vstv %s430
    %v432 = vsel %vm64, %v431, %v426
    %v433 = vsel %vm65, %v431, %v427
    %v434 = vsel %vm66, %v431, %v428
    %v435 = vsel %vm67, %v431, %v429
    %v436 = vmul.f32 %v432, %v32
    %v437 = vmul.f32 %v433, %v33
    %v438 = vmul.f32 %v434, %v34
    %v439 = vmul.f32 %v435, %v35
    %s440 = sld [smem:[#allocation2 + $0x5]]
    %s441 = sld [smem:[#allocation2 + $0x85]]
    %v442 = vstv %s441
    %v443 = vstv %s440
    %v444 = vsel %vm48, %v442, %v443
    %v445 = vsel %vm49, %v442, %v443
    %v446 = vsel %vm50, %v442, %v443
    %v447 = vsel %vm51, %v442, %v443
    %s448 = sld [smem:[#allocation2 + $0x105]]
    %v449 = vstv %s448
    %v450 = vsel %vm52, %v449, %v444
    %v451 = vsel %vm53, %v449, %v445
    %v452 = vsel %vm54, %v449, %v446
    %v453 = vsel %vm55, %v449, %v447
    %s454 = sld [smem:[#allocation2 + $0x185]]
    %v455 = vstv %s454
    %v456 = vsel %vm56, %v455, %v450
    %v457 = vsel %vm57, %v455, %v451
    %v458 = vsel %vm58, %v455, %v452
    %v459 = vsel %vm59, %v455, %v453
    %s460 = sld [smem:[#allocation2 + $0x205]]
    %v461 = vstv %s460
    %v462 = vsel %vm60, %v461, %v456
    %v463 = vsel %vm61, %v461, %v457
    %v464 = vsel %vm62, %v461, %v458
    %v465 = vsel %vm63, %v461, %v459
    %s466 = sld [smem:[#allocation2 + $0x285]]
    %v467 = vstv %s466
    %v468 = vsel %vm64, %v467, %v462
    %v469 = vsel %vm65, %v467, %v463
    %v470 = vsel %vm66, %v467, %v464
    %v471 = vsel %vm67, %v467, %v465
    %v472 = vmul.f32 %v468, %v38
    %v473 = vmul.f32 %v469, %v39
    %v474 = vmul.f32 %v470, %v40
    %v475 = vmul.f32 %v471, %v41
    %v476 = vadd.f32 %v436, %v472
    %v477 = vadd.f32 %v437, %v473
    %v478 = vadd.f32 %v438, %v474
    %v479 = vadd.f32 %v439, %v475
    %s480 = sld [smem:[#allocation2 + $0x6]]
    %s481 = sld [smem:[#allocation2 + $0x86]]
    %v482 = vstv %s481
    %v483 = vstv %s480
    %v484 = vsel %vm48, %v482, %v483
    %v485 = vsel %vm49, %v482, %v483
    %v486 = vsel %vm50, %v482, %v483
    %v487 = vsel %vm51, %v482, %v483
    %s488 = sld [smem:[#allocation2 + $0x106]]
    %v489 = vstv %s488
    %v490 = vsel %vm52, %v489, %v484
    %v491 = vsel %vm53, %v489, %v485
    %v492 = vsel %vm54, %v489, %v486
    %v493 = vsel %vm55, %v489, %v487
    %s494 = sld [smem:[#allocation2 + $0x186]]
    %v495 = vstv %s494
    %v496 = vsel %vm56, %v495, %v490
    %v497 = vsel %vm57, %v495, %v491
    %v498 = vsel %vm58, %v495, %v492
    %v499 = vsel %vm59, %v495, %v493
    %s500 = sld [smem:[#allocation2 + $0x206]]
    %v501 = vstv %s500
    %v502 = vsel %vm60, %v501, %v496
    %v503 = vsel %vm61, %v501, %v497
    %v504 = vsel %vm62, %v501, %v498
    %v505 = vsel %vm63, %v501, %v499
    %s506 = sld [smem:[#allocation2 + $0x286]]
    %v507 = vstv %s506
    %v508 = vsel %vm64, %v507, %v502
    %v509 = vsel %vm65, %v507, %v503
    %v510 = vsel %vm66, %v507, %v504
    %v511 = vsel %vm67, %v507, %v505
    %v512 = vmul.f32 %v508, %v44
    %v513 = vmul.f32 %v509, %v45
    %v514 = vmul.f32 %v510, %v46
    %v515 = vmul.f32 %v511, %v47
    %v516 = vadd.f32 %v476, %v512
    %v517 = vadd.f32 %v477, %v513
    %v518 = vadd.f32 %v478, %v514
    %v519 = vadd.f32 %v479, %v515
    %s520 = sld [smem:[#allocation2 + $0x7]]
    %s521 = sld [smem:[#allocation2 + $0x87]]
    %v522 = vstv %s521
    %v523 = vstv %s520
    %v524 = vsel %vm48, %v522, %v523
    %v525 = vsel %vm49, %v522, %v523
    %v526 = vsel %vm50, %v522, %v523
    %v527 = vsel %vm51, %v522, %v523
    %s528 = sld [smem:[#allocation2 + $0x107]]
    %v529 = vstv %s528
    %v530 = vsel %vm52, %v529, %v524
    %v531 = vsel %vm53, %v529, %v525
    %v532 = vsel %vm54, %v529, %v526
    %v533 = vsel %vm55, %v529, %v527
    %s534 = sld [smem:[#allocation2 + $0x187]]
    %v535 = vstv %s534
    %v536 = vsel %vm56, %v535, %v530
    %v537 = vsel %vm57, %v535, %v531
    %v538 = vsel %vm58, %v535, %v532
    %v539 = vsel %vm59, %v535, %v533
    %s540 = sld [smem:[#allocation2 + $0x207]]
    %v541 = vstv %s540
    %v542 = vsel %vm60, %v541, %v536
    %v543 = vsel %vm61, %v541, %v537
    %v544 = vsel %vm62, %v541, %v538
    %v545 = vsel %vm63, %v541, %v539
    %s546 = sld [smem:[#allocation2 + $0x287]]
    %v547 = vstv %s546
    %v548 = vsel %vm64, %v547, %v542
    %v549 = vsel %vm65, %v547, %v543
    %v550 = vsel %vm66, %v547, %v544
    %v551 = vsel %vm67, %v547, %v545
    %v552 = vadd.f32 %v516, %v548
    %v553 = vadd.f32 %v517, %v549
    %v554 = vadd.f32 %v518, %v550
    %v555 = vadd.f32 %v519, %v551
    %v556 = vmul.f32 %v552, %v240
    %v557 = vmul.f32 %v553, %v241
    %v558 = vmul.f32 %v554, %v242
    %v559 = vmul.f32 %v555, %v243
    %s560 = scalar_lea.vmem %s3, %s36
    %561 = vst [vmem:[%s560] sm:$0xff] %v556
    %562 = vst [vmem:[%s560 + $0x8] sm:$0xff] %v557
    %563 = vst [vmem:[%s560 + $0x10] sm:$0xff] %v558
    %564 = vst [vmem:[%s560 + $0x18] sm:$0xff] %v559
    %s565 = sld [smem:[#allocation2 + $0x8]]
    %s566 = sld [smem:[#allocation2 + $0x88]]
    %v567 = vstv %s566
    %v568 = vstv %s565
    %v569 = vsel %vm48, %v567, %v568
    %v570 = vsel %vm49, %v567, %v568
    %v571 = vsel %vm50, %v567, %v568
    %v572 = vsel %vm51, %v567, %v568
    %s573 = sld [smem:[#allocation2 + $0x108]]
    %v574 = vstv %s573
    %v575 = vsel %vm52, %v574, %v569
    %v576 = vsel %vm53, %v574, %v570
    %v577 = vsel %vm54, %v574, %v571
    %v578 = vsel %vm55, %v574, %v572
    %s579 = sld [smem:[#allocation2 + $0x188]]
    %v580 = vstv %s579
    %v581 = vsel %vm56, %v580, %v575
    %v582 = vsel %vm57, %v580, %v576
    %v583 = vsel %vm58, %v580, %v577
    %v584 = vsel %vm59, %v580, %v578
    %s585 = sld [smem:[#allocation2 + $0x208]]
    %v586 = vstv %s585
    %v587 = vsel %vm60, %v586, %v581
    %v588 = vsel %vm61, %v586, %v582
    %v589 = vsel %vm62, %v586, %v583
    %v590 = vsel %vm63, %v586, %v584
    %s591 = sld [smem:[#allocation2 + $0x288]]
    %v592 = vstv %s591
    %v593 = vsel %vm64, %v592, %v587
    %v594 = vsel %vm65, %v592, %v588
    %v595 = vsel %vm66, %v592, %v589
    %v596 = vsel %vm67, %v592, %v590
    %v597 = vmul.f32 %v593, %v32
    %v598 = vmul.f32 %v594, %v33
    %v599 = vmul.f32 %v595, %v34
    %v600 = vmul.f32 %v596, %v35
    %s601 = sld [smem:[#allocation2 + $0x9]]
    %s602 = sld [smem:[#allocation2 + $0x89]]
    %v603 = vstv %s602
    %v604 = vstv %s601
    %v605 = vsel %vm48, %v603, %v604
    %v606 = vsel %vm49, %v603, %v604
    %v607 = vsel %vm50, %v603, %v604
    %v608 = vsel %vm51, %v603, %v604
    %s609 = sld [smem:[#allocation2 + $0x109]]
    %v610 = vstv %s609
    %v611 = vsel %vm52, %v610, %v605
    %v612 = vsel %vm53, %v610, %v606
    %v613 = vsel %vm54, %v610, %v607
    %v614 = vsel %vm55, %v610, %v608
    %s615 = sld [smem:[#allocation2 + $0x189]]
    %v616 = vstv %s615
    %v617 = vsel %vm56, %v616, %v611
    %v618 = vsel %vm57, %v616, %v612
    %v619 = vsel %vm58, %v616, %v613
    %v620 = vsel %vm59, %v616, %v614
    %s621 = sld [smem:[#allocation2 + $0x209]]
    %v622 = vstv %s621
    %v623 = vsel %vm60, %v622, %v617
    %v624 = vsel %vm61, %v622, %v618
    %v625 = vsel %vm62, %v622, %v619
    %v626 = vsel %vm63, %v622, %v620
    %s627 = sld [smem:[#allocation2 + $0x289]]
    %v628 = vstv %s627
    %v629 = vsel %vm64, %v628, %v623
    %v630 = vsel %vm65, %v628, %v624
    %v631 = vsel %vm66, %v628, %v625
    %v632 = vsel %vm67, %v628, %v626
    %v633 = vmul.f32 %v629, %v38
    %v634 = vmul.f32 %v630, %v39
    %v635 = vmul.f32 %v631, %v40
    %v636 = vmul.f32 %v632, %v41
    %v637 = vadd.f32 %v597, %v633
    %v638 = vadd.f32 %v598, %v634
    %v639 = vadd.f32 %v599, %v635
    %v640 = vadd.f32 %v600, %v636
    %s641 = sld [smem:[#allocation2 + $0xa]]
    %s642 = sld [smem:[#allocation2 + $0x8a]]
    %v643 = vstv %s642
    %v644 = vstv %s641
    %v645 = vsel %vm48, %v643, %v644
    %v646 = vsel %vm49, %v643, %v644
    %v647 = vsel %vm50, %v643, %v644
    %v648 = vsel %vm51, %v643, %v644
    %s649 = sld [smem:[#allocation2 + $0x10a]]
    %v650 = vstv %s649
    %v651 = vsel %vm52, %v650, %v645
    %v652 = vsel %vm53, %v650, %v646
    %v653 = vsel %vm54, %v650, %v647
    %v654 = vsel %vm55, %v650, %v648
    %s655 = sld [smem:[#allocation2 + $0x18a]]
    %v656 = vstv %s655
    %v657 = vsel %vm56, %v656, %v651
    %v658 = vsel %vm57, %v656, %v652
    %v659 = vsel %vm58, %v656, %v653
    %v660 = vsel %vm59, %v656, %v654
    %s661 = sld [smem:[#allocation2 + $0x20a]]
    %v662 = vstv %s661
    %v663 = vsel %vm60, %v662, %v657
    %v664 = vsel %vm61, %v662, %v658
    %v665 = vsel %vm62, %v662, %v659
    %v666 = vsel %vm63, %v662, %v660
    %s667 = sld [smem:[#allocation2 + $0x28a]]
    %v668 = vstv %s667
    %v669 = vsel %vm64, %v668, %v663
    %v670 = vsel %vm65, %v668, %v664
    %v671 = vsel %vm66, %v668, %v665
    %v672 = vsel %vm67, %v668, %v666
    %v673 = vmul.f32 %v669, %v44
    %v674 = vmul.f32 %v670, %v45
    %v675 = vmul.f32 %v671, %v46
    %v676 = vmul.f32 %v672, %v47
    %v677 = vadd.f32 %v637, %v673
    %v678 = vadd.f32 %v638, %v674
    %v679 = vadd.f32 %v639, %v675
    %v680 = vadd.f32 %v640, %v676
    %s681 = sld [smem:[#allocation2 + $0xb]]
    %s682 = sld [smem:[#allocation2 + $0x8b]]
    %v683 = vstv %s682
    %v684 = vstv %s681
    %v685 = vsel %vm48, %v683, %v684
    %v686 = vsel %vm49, %v683, %v684
    %v687 = vsel %vm50, %v683, %v684
    %v688 = vsel %vm51, %v683, %v684
    %s689 = sld [smem:[#allocation2 + $0x10b]]
    %v690 = vstv %s689
    %v691 = vsel %vm52, %v690, %v685
    %v692 = vsel %vm53, %v690, %v686
    %v693 = vsel %vm54, %v690, %v687
    %v694 = vsel %vm55, %v690, %v688
    %s695 = sld [smem:[#allocation2 + $0x18b]]
    %v696 = vstv %s695
    %v697 = vsel %vm56, %v696, %v691
    %v698 = vsel %vm57, %v696, %v692
    %v699 = vsel %vm58, %v696, %v693
    %v700 = vsel %vm59, %v696, %v694
    %s701 = sld [smem:[#allocation2 + $0x20b]]
    %v702 = vstv %s701
    %v703 = vsel %vm60, %v702, %v697
    %v704 = vsel %vm61, %v702, %v698
    %v705 = vsel %vm62, %v702, %v699
    %v706 = vsel %vm63, %v702, %v700
    %s707 = sld [smem:[#allocation2 + $0x28b]]
    %v708 = vstv %s707
    %v709 = vsel %vm64, %v708, %v703
    %v710 = vsel %vm65, %v708, %v704
    %v711 = vsel %vm66, %v708, %v705
    %v712 = vsel %vm67, %v708, %v706
    %v713 = vadd.f32 %v677, %v709
    %v714 = vadd.f32 %v678, %v710
    %v715 = vadd.f32 %v679, %v711
    %v716 = vadd.f32 %v680, %v712
    %v717 = vmul.f32 %v713, %v240
    %v718 = vmul.f32 %v714, %v241
    %v719 = vmul.f32 %v715, %v242
    %v720 = vmul.f32 %v716, %v243
    %s721 = scalar_lea.vmem %s3, %s42
    %722 = vst [vmem:[%s721] sm:$0xff] %v717
    %723 = vst [vmem:[%s721 + $0x8] sm:$0xff] %v718
    %724 = vst [vmem:[%s721 + $0x10] sm:$0xff] %v719
    %725 = vst [vmem:[%s721 + $0x18] sm:$0xff] %v720
    // Predicated region
    $region18: #{warp_proj_forward.1} parent=1 // pred_check
      _
    $region19: #{warp_proj_forward.1} parent=1 // pred_check_branch
      %727 = sbr.rel (0) target = $region21
    $region20: #{warp_proj_forward.1} parent=1 // pred_region
      _
    $region21: #{warp_proj_forward.1} parent=1 // pred_fallthru
      _
    // Predicated region
    $region22: #{warp_proj_forward.1} parent=1 // pred_check
      _
    $region23: #{warp_proj_forward.1} parent=1 // pred_check_branch
      %729 = sbr.rel (0) target = $region25
    $region24: #{warp_proj_forward.1} parent=1 // pred_region
      _
    $region25: #{warp_proj_forward.1} parent=1 // pred_fallthru
      _
    %730 = vsyncpa [#allocation3], 1

</llo_original>
